<compile_context>
chip_gen: v7x
topology: tpu7x:2x2x1
jax: 0.10.0
libtpu: 0.0.40
codegen_flags: <defaults>
</compile_context>

<pallas_src>
import jax
import jax.numpy as jnp
from jax.experimental import pallas as pl
from jax.experimental.pallas import tpu as pltpu

BN_EPS = 1e-5       # PyTorch BatchNorm1d default
STATE_DIM = 1024


def state_dir_kernel(state_ref, wT_ref, b_ref, out_ref):
    # (B, 1024) contracted with (C, 1024) over the 1024 axis -> (B, C) on the MXU.
    lin = jax.lax.dot_general(
        state_ref[...], wT_ref[...],
        dimension_numbers=(((1,), (1,)), ((), ())),
        preferred_element_type=jnp.float32)
    out_ref[...] = jax.nn.sigmoid(lin + b_ref[...])          # EUP sigmoid


def weighted_sum_kernel(sd_ref, preds_ref, out_ref):
    # out[tb, :] = sum_c state_dir[tb, c] * preds[tb, c, :]
    # VPU broadcast-multiply + cross-sublane (channel) reduce; no M=1 MXU matmul.
    sd = sd_ref[...].astype(jnp.float32)                      # (TB, C)
    p = preds_ref[...].astype(jnp.float32)                    # (TB, C, TH)
    acc = jnp.sum(sd[:, :, None] * p, axis=1)                 # (TB, TH)
    out_ref[...] = acc.astype(out_ref.dtype)


def _choose_hw_tile(hw, c, tb, elem_bytes, budget_bytes=6 * 1024 * 1024):
    """Largest lane-aligned HW tile that divides HW and keeps the double-buffered
    preds block under budget; full HW if HW is not a multiple of 128."""
    if hw % 128 != 0:
        return hw
    th = hw
    while th % 256 == 0 and 2 * tb * c * th * elem_bytes > budget_bytes:
        th //= 2
    return th


def fuse_atten(preds, state, params):
    b, c, h, w = preds.shape
    hw = h * w
    dt = preds.dtype
    ebytes = jnp.dtype(dt).itemsize

    # ---- Fold BatchNorm1d (inference / running stats) into the Linear ----
    scale = params["gamma"] * jax.lax.rsqrt(params["rv"] + BN_EPS)          # (C,)
    w_fold_t = (params["W"] * scale[None, :]).T                             # (C, 1024)
    b_fold = ((params["bias"] - params["rm"]) * scale
              + params["beta"]).reshape(1, c)                               # (1, C)

    # ---- Kernel 1: state_dir = sigmoid(state @ W' + b') once for all rows ----
    state_dir = pl.pallas_call(
        state_dir_kernel,
        out_shape=jax.ShapeDtypeStruct((b, c), jnp.float32),
        grid_spec=pltpu.PrefetchScalarGridSpec(
            num_scalar_prefetch=0,
            grid=(1,),
            in_specs=[pl.BlockSpec((b, STATE_DIM), lambda i: (0, 0)),
                      pl.BlockSpec((c, STATE_DIM), lambda i: (0, 0)),
                      pl.BlockSpec((1, c), lambda i: (0, 0))],
            out_specs=pl.BlockSpec((b, c), lambda i: (0, 0))),
        compiler_params=pltpu.CompilerParams(
            dimension_semantics=("arbitrary",)),
        cost_estimate=pl.CostEstimate(
            flops=2 * b * STATE_DIM * c,
            transcendentals=b * c,
            bytes_accessed=4 * (b * STATE_DIM + c * STATE_DIM + c + b * c)),
    )(state, w_fold_t, b_fold)

    # ---- Kernel 2: stream preds, weighted channel sum, dense (TB, TH) output ----
    tb = b if b <= 8 else 8
    b_pad = b if b % tb == 0 else ((b + tb - 1) // tb) * tb
    preds_flat = preds.reshape(b, c, hw)
    sd = state_dir
    if b_pad != b:
        preds_flat = jnp.pad(preds_flat, ((0, b_pad - b), (0, 0), (0, 0)))
        sd = jnp.pad(sd, ((0, b_pad - b), (0, 0)))

    th = _choose_hw_tile(hw, c, tb, ebytes)
    grid = (b_pad // tb, hw // th)

    # NOTE: preds is streamed in its native dtype; a bf16 cast (v5e bandwidth win)
    # is intentionally skipped to preserve the module's f32 numerics.
    out = pl.pallas_call(
        weighted_sum_kernel,
        out_shape=jax.ShapeDtypeStruct((b_pad, hw), dt),
        grid_spec=pltpu.PrefetchScalarGridSpec(
            num_scalar_prefetch=0,
            grid=grid,
            in_specs=[
                pl.BlockSpec((tb, c), lambda i, j: (i, 0)),        # state_dir
                pl.BlockSpec((tb, c, th), lambda i, j: (i, 0, j)),  # preds
            ],
            out_specs=pl.BlockSpec((tb, th), lambda i, j: (i, j))),
        compiler_params=pltpu.CompilerParams(
            dimension_semantics=("parallel", "parallel"),
            vmem_limit_bytes=32 * 1024 * 1024),
        cost_estimate=pl.CostEstimate(
            flops=2 * b_pad * c * hw,
            transcendentals=0,
            bytes_accessed=ebytes * (b_pad * c * hw + b_pad * hw) + 4 * b_pad * c),
    )(sd, preds_flat)

    return out[:b].reshape(b, 1, h, w)


def fuse_atten_ref(preds, state, params):
    """Plain-JAX reference matching the PyTorch forward (BN in eval mode)."""
    b, c, h, w = preds.shape
    lin = state @ params["W"] + params["bias"]
    bn = ((lin - params["rm"]) / jnp.sqrt(params["rv"] + BN_EPS)
          * params["gamma"] + params["beta"])
    state_dir = jax.nn.sigmoid(bn).reshape(b, 1, c)
    out = jnp.matmul(state_dir, preds.reshape(b, c, h * w))
    return out.reshape(b, 1, h, w)


if __name__ == "__main__":
    B, IN_DIM, H, W = 2, 8, 16, 16

    key = jax.random.PRNGKey(0)
    k_preds, k_state, k_w, k_b, k_g, k_be, k_rm, k_rv = jax.random.split(key, 8)

    preds = jax.random.normal(k_preds, (B, IN_DIM, H, W), dtype=jnp.float32)
    state = jax.random.normal(k_state, (B, 1024), dtype=jnp.float32)

    # Deterministic synthetic parameters (shapes match nn.Linear(1024, in_dim)
    # + nn.BatchNorm1d(in_dim)); weight stored transposed as (1024, in_dim).
    bound = 1.0 / (1024.0 ** 0.5)
    params = {
        "W":     jax.random.uniform(k_w, (1024, IN_DIM), jnp.float32, -bound, bound),
        "bias":  jax.random.uniform(k_b, (IN_DIM,), jnp.float32, -bound, bound),
        "gamma": 1.0 + 0.1 * jax.random.normal(k_g, (IN_DIM,), jnp.float32),
        "beta":  0.1 * jax.random.normal(k_be, (IN_DIM,), jnp.float32),
        "rm":    0.1 * jax.random.normal(k_rm, (IN_DIM,), jnp.float32),
        "rv":    0.5 + jnp.abs(jax.random.normal(k_rv, (IN_DIM,), jnp.float32)),
    }

    out = jax.block_until_ready(fuse_atten(preds, state, params))
    ref = jax.block_until_ready(fuse_atten_ref(preds, state, params))

    assert out.shape == (B, 1, H, W), out.shape
    assert jnp.allclose(out, ref, atol=1e-4, rtol=1e-4), "mismatch vs reference"
    print("KERNEL_OK")
</pallas_src>

<mosaic_0001>
module attributes {stable_mosaic.version = 11 : i64} {
  func.func @state_dir_kernel(%arg0: i32, %arg1: memref<2x1024xf32, #tpu.memory_space<vmem>>, %arg2: memref<8x1024xf32, #tpu.memory_space<vmem>>, %arg3: memref<1x8xf32, #tpu.memory_space<vmem>>, %arg4: memref<2x8xf32, #tpu.memory_space<vmem>>) attributes {dimension_semantics = [#tpu.dimension_semantics<arbitrary>], iteration_bounds = array<i64: 1>, scalar_prefetch = 0 : i64, scratch_operands = 0 : i64, tpu.core_type = #tpu.core_type<tc>, window_params = [{pipeline_mode = #tpu.pipeline_mode<synchronous>, transform_indices = @transform_0, window_bounds = array<i64: 2, 1024>}, {pipeline_mode = #tpu.pipeline_mode<synchronous>, transform_indices = @transform_1, window_bounds = array<i64: 8, 1024>}, {pipeline_mode = #tpu.pipeline_mode<synchronous>, transform_indices = @transform_2, window_bounds = array<i64: 1, 8>}, {pipeline_mode = #tpu.pipeline_mode<synchronous>, transform_indices = @transform_3, window_bounds = array<i64: 2, 8>}]} {
    %c0 = arith.constant 0 : index
    %c0_0 = arith.constant 0 : index
    %0 = vector.load %arg1[%c0, %c0_0] : memref<2x1024xf32, #tpu.memory_space<vmem>>, vector<2x1024xf32>
    %c0_1 = arith.constant 0 : index
    %c0_2 = arith.constant 0 : index
    %1 = vector.load %arg2[%c0_1, %c0_2] : memref<8x1024xf32, #tpu.memory_space<vmem>>, vector<8x1024xf32>
    %cst = arith.constant dense<0.000000e+00> : vector<2x8xf32>
    %2 = tpu.matmul %0, %1, %cst {dimension_numbers = #tpu.dot_dimension_numbers<[1], [1], [0], [0], [0, 0, 1, 0], [], []>} : vector<2x1024xf32>, vector<8x1024xf32>, vector<2x8xf32> -> vector<2x8xf32>
    %c0_3 = arith.constant 0 : index
    %c0_4 = arith.constant 0 : index
    %3 = vector.load %arg3[%c0_3, %c0_4] : memref<1x8xf32, #tpu.memory_space<vmem>>, vector<1x8xf32>
    %4 = vector.broadcast %3 : vector<1x8xf32> to vector<2x8xf32>
    %5 = arith.addf %2, %4 : vector<2x8xf32>
    %6 = arith.negf %5 : vector<2x8xf32>
    %7 = math.exp %6 : vector<2x8xf32>
    %cst_5 = arith.constant 1.000000e+00 : f32
    %8 = vector.broadcast %cst_5 : f32 to vector<2x8xf32>
    %9 = arith.addf %8, %7 : vector<2x8xf32>
    %10 = arith.divf %8, %9 : vector<2x8xf32>
    %c0_6 = arith.constant 0 : index
    %c0_7 = arith.constant 0 : index
    %11 = vector.load %arg4[%c0_6, %c0_7] : memref<2x8xf32, #tpu.memory_space<vmem>>, vector<2x8xf32>
    tpu.vector_store %arg4[%c0_6, %c0_7], %10 {strides = array<i32>} : memref<2x8xf32, #tpu.memory_space<vmem>>, vector<2x8xf32>,
    return
  }
  func.func @transform_0(%arg0: i32) -> (i32, i32) {
    %c0_i32 = arith.constant 0 : i32
    %c0_i32_0 = arith.constant 0 : i32
    %c0_i32_1 = arith.constant 0 : i32
    return %c0_i32, %c0_i32_0 : i32, i32
  }
  func.func @transform_1(%arg0: i32) -> (i32, i32) {
    %c0_i32 = arith.constant 0 : i32
    %c0_i32_0 = arith.constant 0 : i32
    %c0_i32_1 = arith.constant 0 : i32
    return %c0_i32, %c0_i32_0 : i32, i32
  }
  func.func @transform_2(%arg0: i32) -> (i32, i32) {
    %c0_i32 = arith.constant 0 : i32
    %c0_i32_0 = arith.constant 0 : i32
    %c0_i32_1 = arith.constant 0 : i32
    return %c0_i32, %c0_i32_0 : i32, i32
  }
  func.func @transform_3(%arg0: i32) -> (i32, i32) {
    %c0_i32 = arith.constant 0 : i32
    %c0_i32_0 = arith.constant 0 : i32
    %c0_i32_1 = arith.constant 0 : i32
    return %c0_i32, %c0_i32_0 : i32, i32
  }
}

</mosaic_0001>

<llo_original>
// kernel: tpu_custom_call.1
$region0: #{tpu_custom_call.1}
  #allocation0 [shape = 'u32[]', space=smem, size = 0x4, offset = 0x4, fixed_abs, tag = 'smem constant byte address 0x4 - core index']
  #allocation1 [shape = 'u32[144,128]{1,0:T(1,128)}', space=vmem, size = 0x12000, scoped, tag = 'internal scratch']
  %s0 = inlined_call_operand.hbm [shape: f32[2,1024], index: 0, kind: input, shape index: {}]
  %s1 = inlined_call_operand.hbm [shape: f32[8,1024], index: 1, kind: input, shape index: {}]
  %s2 = inlined_call_operand.vmem [shape: f32[1,8], index: 2, kind: input, shape index: {}]
  %s3 = inlined_call_operand.hbm [shape: f32[2,8], index: 3, kind: output, shape index: {}]
  %s4 = sld [smem:[#allocation0]]
  $region30: #{tpu_custom_call.1} parent=0
    _
  %s6 = ssub.s32 1, %s4
  %s7 = scalar_select 0, %s6, %s4
  $region1: #{tpu_custom_call.1} parent=0
    #allocation2 [shape = 'u8[8192]{0}', space=vmem, size = 0x2000, scoped, tag = 'input window, operand 0, single buffered']
    #allocation3 [shape = 's32[1]{0}', space=sflag, size = 0x4, scoped, tag = 'scoped memory for tpu_custom_call.1']
    #allocation4 [shape = 's32[1]{0}', space=sflag, size = 0x4, scoped, tag = 'scoped memory for tpu_custom_call.1']
    #allocation5 [shape = 'u8[32768]{0}', space=vmem, size = 0x8000, scoped, tag = 'input window, operand 1, single buffered']
    #allocation6 [shape = 's32[1]{0}', space=sflag, size = 0x4, scoped, tag = 'scoped memory for tpu_custom_call.1']
    #allocation7 [shape = 'u8[1024]{0}', space=vmem, size = 0x400, scoped, tag = 'output window, operand 0, single buffered']
    %8 = vsyncpa [#allocation3], 0
    %9 = vsyncpa [#allocation6], 0
    %10 = vsyncpa [#allocation4], 0
    // Predicated region
    $region2: #{tpu_custom_call.1} parent=1 // pred_check
      _
    $region3: #{tpu_custom_call.1} parent=1 // pred_check_branch
      %12 = sbr.rel (0) target = $region5
    $region4: #{tpu_custom_call.1} parent=1 // pred_region
      %s14 = ssub.s32 256, 256
      %15 = vsyncadd [#allocation3], %s14
      %s17 = sshll.u32 [#allocation2], 4
      %s18 = int_to_ptr.vmem [resolvable:$true] %s17
      %20 = dma.hbm_to_vmem [thread:$0]  %s0, 256, %s18, [#allocation3]
    $region5: #{tpu_custom_call.1} parent=1 // pred_fallthru
      _
    // Predicated region
    $region6: #{tpu_custom_call.1} parent=1 // pred_check
      _
    $region7: #{tpu_custom_call.1} parent=1 // pred_check_branch
      %22 = sbr.rel (0) target = $region9
    $region8: #{tpu_custom_call.1} parent=1 // pred_region
      %s24 = ssub.s32 1024, 1024
      %25 = vsyncadd [#allocation6], %s24
      %s27 = sshll.u32 [#allocation5], 4
      %s28 = int_to_ptr.vmem [resolvable:$true] %s27
      %30 = dma.hbm_to_vmem [thread:$0]  %s1, 1024, %s28, [#allocation6]
    $region9: #{tpu_custom_call.1} parent=1 // pred_fallthru
      _
    // Predicated region
    $region10: #{tpu_custom_call.1} parent=1 // pred_check
      _
    $region11: #{tpu_custom_call.1} parent=1 // pred_check_branch
      %32 = sbr.rel (0) target = $region13
    $region12: #{tpu_custom_call.1} parent=1 // pred_region
      _
    $region13: #{tpu_custom_call.1} parent=1 // pred_fallthru
      _
    // Predicated region
    $region14: #{tpu_custom_call.1} parent=1 // pred_check
      _
    $region15: #{tpu_custom_call.1} parent=1 // pred_check_branch
      %34 = sbr.rel (0) target = $region17
    $region16: #{tpu_custom_call.1} parent=1 // pred_region
      %35 = dma.done [#allocation3], 256
    $region17: #{tpu_custom_call.1} parent=1 // pred_fallthru
      _
    // Predicated region
    $region18: #{tpu_custom_call.1} parent=1 // pred_check
      _
    $region19: #{tpu_custom_call.1} parent=1 // pred_check_branch
      %37 = sbr.rel (0) target = $region21
    $region20: #{tpu_custom_call.1} parent=1 // pred_region
      %38 = dma.done [#allocation6], 1024
    $region21: #{tpu_custom_call.1} parent=1 // pred_fallthru
      _
    %v39 = vld [vmem:[#allocation2] sm:$0xff]
    %v40 = vld [vmem:[#allocation2 + $0x8] sm:$0xff]
    %v41 = vld [vmem:[#allocation5] sm:$0xff]
    %v42 = vld [vmem:[#allocation5 + $0x8] sm:$0xff]
    %v43 = vld [vmem:[#allocation5 + $0x10] sm:$0xff]
    %v44 = vld [vmem:[#allocation5 + $0x18] sm:$0xff]
    %v45 = vld [vmem:[#allocation5 + $0x20] sm:$0xff]
    %v46 = vld [vmem:[#allocation5 + $0x28] sm:$0xff]
    %v47 = vld [vmem:[#allocation5 + $0x30] sm:$0xff]
    %v48 = vld [vmem:[#allocation5 + $0x38] sm:$0xff]
    %v49 = vld [vmem:[%s2] sm:$0x1]
    %v51 = vlaneseq
    %v52 = vshrl.u32 %v51, 7
    %v53 = vsub.s32 0, %v52
    %v54 = vrot.slane %v49, %v53
    %v58 = vcombine.high %v39, %v39
    %v60 = vunpack.c.l.s4 1983009808
    %v61 = vunpack.c.0.s8 %v60
    %v62 = vlaneseq
    %v63 = vshrl.u32 %v62, 7
    %v64 = vsub.s32 %v61, %v63
    %v65 = vrot.slane %v39, %v64
    %v67 = vunpack.c.l.s4 1983009808
    %v68 = vunpack.c.0.s8 %v67
    %v69 = vlaneseq
    %v70 = vshrl.u32 %v69, 7
    %v71 = vsub.s32 %v68, %v70
    %v72 = vrot.slane %v58, %v71
    %v73 = vcombine.high %v65, %v65
    %v74 = vcombine.high %v72, %v72
    %v75 = vcombine.high %v40, %v40
    %v77 = vunpack.c.l.s4 1983009808
    %v78 = vunpack.c.0.s8 %v77
    %v79 = vlaneseq
    %v80 = vshrl.u32 %v79, 7
    %v81 = vsub.s32 %v78, %v80
    %v82 = vrot.slane %v40, %v81
    %v84 = vunpack.c.l.s4 1983009808
    %v85 = vunpack.c.0.s8 %v84
    %v86 = vlaneseq
    %v87 = vshrl.u32 %v86, 7
    %v88 = vsub.s32 %v85, %v87
    %v89 = vrot.slane %v75, %v88
    %v90 = vcombine.high %v82, %v82
    %v91 = vcombine.high %v89, %v89
    %100 = vmatprep.subr.mxu0 %v42
    %101 = vmatpush1.xpose.msra.mxu0 %v41
    %102 = vmatprep.subr.mxu0 0.0
    %103 = vmatpush1.xpose.msra.mxu0 0.0
    %104 = vmatprep.subr.mxu0 0.0
    %105 = vmatpush1.xpose.msra.mxu0 0.0
    %106 = vmatprep.subr.mxu0 0.0
    %107 = vmatpush1.xpose.msra.mxu0 0.0
    %108 = vmatprep.subr.mxu0 0.0
    %109 = vmatpush1.xpose.msra.mxu0 0.0
    %110 = vmatprep.subr.mxu0 0.0
    %111 = vmatpush1.xpose.msra.mxu0 0.0
    %112 = vmatprep.subr.mxu0 0.0
    %113 = vmatpush1.xpose.msra.mxu0 0.0
    %114 = vmatprep.subr.mxu0 0.0
    %115 = vmatpush1.xpose.msra.mxu0 0.0
    %116 = vmatprep.subr.mxu0 0.0
    %117 = vmatpush1.xpose.msra.mxu0 0.0
    %118 = vmatprep.subr.mxu0 0.0
    %119 = vmatpush1.xpose.msra.mxu0 0.0
    %120 = vmatprep.subr.mxu0 0.0
    %121 = vmatpush1.xpose.msra.mxu0 0.0
    %122 = vmatprep.subr.mxu0 0.0
    %123 = vmatpush1.xpose.msra.mxu0 0.0
    %124 = vmatprep.subr.mxu0 0.0
    %125 = vmatpush1.xpose.msra.mxu0 0.0
    %126 = vmatprep.subr.mxu0 0.0
    %127 = vmatpush1.xpose.msra.mxu0 0.0
    %128 = vmatprep.subr.mxu0 0.0
    %129 = vmatpush1.xpose.msra.mxu0 0.0
    %130 = vmatprep.subr.mxu0 0.0
    %131 = vmatpush1.xpose.msra.mxu0 0.0
    %132 = vmatprep.subr.mxu0 0.0
    %133 = vmatpush1.xpose.msra.mxu0 0.0
    %134 = vmatprep.subr.mxu0 0.0
    %135 = vmatpush1.xpose.msra.mxu0 0.0
    %136 = vmatprep.subr.mxu0 0.0
    %137 = vmatpush1.xpose.msra.mxu0 0.0
    %138 = vmatprep.subr.mxu0 0.0
    %139 = vmatpush1.xpose.msra.mxu0 0.0
    %140 = vmatprep.subr.mxu0 0.0
    %141 = vmatpush1.xpose.msra.mxu0 0.0
    %142 = vmatprep.subr.mxu0 0.0
    %143 = vmatpush1.xpose.msra.mxu0 0.0
    %144 = vmatprep.subr.mxu0 0.0
    %145 = vmatpush1.xpose.msra.mxu0 0.0
    %146 = vmatprep.subr.mxu0 0.0
    %147 = vmatpush1.xpose.msra.mxu0 0.0
    %148 = vmatprep.subr.mxu0 0.0
    %149 = vmatpush1.xpose.msra.mxu0 0.0
    %150 = vmatprep.subr.mxu0 0.0
    %151 = vmatpush1.xpose.msra.mxu0 0.0
    %152 = vmatprep.subr.mxu0 0.0
    %153 = vmatpush1.xpose.msra.mxu0 0.0
    %154 = vmatprep.subr.mxu0 0.0
    %155 = vmatpush1.xpose.msra.mxu0 0.0
    %156 = vmatprep.subr.mxu0 0.0
    %157 = vmatpush1.xpose.msra.mxu0 0.0
    %158 = vmatprep.subr.mxu0 0.0
    %159 = vmatpush1.xpose.msra.mxu0 0.0
    %160 = vmatprep.subr.mxu0 0.0
    %161 = vmatpush1.xpose.msra.mxu0 0.0
    %162 = vmatprep.subr.mxu0 0.0
    %163 = vmatpush1.xpose.msra.mxu0 0.0
    %164 = vmatprep.mubr.f32.mxu0 %v73
    %165 = vmatmul.mubr.f32.gmra.mrb[0].mxu0 %v65
    %v166 = vpop.f32.mrb[0].mxu0
    %v167 = vadd.f32 %v54, %v166
    %v168 = vpop.f32.mrb[0].mxu0
    %169 = vdwg.mxu0
    %170 = vmatprep.subr.mxu0 %v44
    %171 = vmatpush1.xpose.msra.mxu0 %v43
    %172 = vmatprep.subr.mxu0 0.0
    %173 = vmatpush1.xpose.msra.mxu0 0.0
    %174 = vmatprep.subr.mxu0 0.0
    %175 = vmatpush1.xpose.msra.mxu0 0.0
    %176 = vmatprep.subr.mxu0 0.0
    %177 = vmatpush1.xpose.msra.mxu0 0.0
    %178 = vmatprep.subr.mxu0 0.0
    %179 = vmatpush1.xpose.msra.mxu0 0.0
    %180 = vmatprep.subr.mxu0 0.0
    %181 = vmatpush1.xpose.msra.mxu0 0.0
    %182 = vmatprep.subr.mxu0 0.0
    %183 = vmatpush1.xpose.msra.mxu0 0.0
    %184 = vmatprep.subr.mxu0 0.0
    %185 = vmatpush1.xpose.msra.mxu0 0.0
    %186 = vmatprep.subr.mxu0 0.0
    %187 = vmatpush1.xpose.msra.mxu0 0.0
    %188 = vmatprep.subr.mxu0 0.0
    %189 = vmatpush1.xpose.msra.mxu0 0.0
    %190 = vmatprep.subr.mxu0 0.0
    %191 = vmatpush1.xpose.msra.mxu0 0.0
    %192 = vmatprep.subr.mxu0 0.0
    %193 = vmatpush1.xpose.msra.mxu0 0.0
    %194 = vmatprep.subr.mxu0 0.0
    %195 = vmatpush1.xpose.msra.mxu0 0.0
    %196 = vmatprep.subr.mxu0 0.0
    %197 = vmatpush1.xpose.msra.mxu0 0.0
    %198 = vmatprep.subr.mxu0 0.0
    %199 = vmatpush1.xpose.msra.mxu0 0.0
    %200 = vmatprep.subr.mxu0 0.0
    %201 = vmatpush1.xpose.msra.mxu0 0.0
    %202 = vmatprep.subr.mxu0 0.0
    %203 = vmatpush1.xpose.msra.mxu0 0.0
    %204 = vmatprep.subr.mxu0 0.0
    %205 = vmatpush1.xpose.msra.mxu0 0.0
    %206 = vmatprep.subr.mxu0 0.0
    %207 = vmatpush1.xpose.msra.mxu0 0.0
    %208 = vmatprep.subr.mxu0 0.0
    %209 = vmatpush1.xpose.msra.mxu0 0.0
    %210 = vmatprep.subr.mxu0 0.0
    %211 = vmatpush1.xpose.msra.mxu0 0.0
    %212 = vmatprep.subr.mxu0 0.0
    %213 = vmatpush1.xpose.msra.mxu0 0.0
    %214 = vmatprep.subr.mxu0 0.0
    %215 = vmatpush1.xpose.msra.mxu0 0.0
    %216 = vmatprep.subr.mxu0 0.0
    %217 = vmatpush1.xpose.msra.mxu0 0.0
    %218 = vmatprep.subr.mxu0 0.0
    %219 = vmatpush1.xpose.msra.mxu0 0.0
    %220 = vmatprep.subr.mxu0 0.0
    %221 = vmatpush1.xpose.msra.mxu0 0.0
    %222 = vmatprep.subr.mxu0 0.0
    %223 = vmatpush1.xpose.msra.mxu0 0.0
    %224 = vmatprep.subr.mxu0 0.0
    %225 = vmatpush1.xpose.msra.mxu0 0.0
    %226 = vmatprep.subr.mxu0 0.0
    %227 = vmatpush1.xpose.msra.mxu0 0.0
    %228 = vmatprep.subr.mxu0 0.0
    %229 = vmatpush1.xpose.msra.mxu0 0.0
    %230 = vmatprep.subr.mxu0 0.0
    %231 = vmatpush1.xpose.msra.mxu0 0.0
    %232 = vmatprep.subr.mxu0 0.0
    %233 = vmatpush1.xpose.msra.mxu0 0.0
    %234 = vmatprep.mubr.f32.mxu0 %v74
    %235 = vmatmul.mubr.f32.gmra.mrb[0].mxu0 %v72
    %v236 = vpop.f32.mrb[0].mxu0
    %v237 = vadd.f32 %v167, %v236
    %v238 = vpop.f32.mrb[0].mxu0
    %239 = vdwg.mxu0
    %240 = vmatprep.subr.mxu0 %v46
    %241 = vmatpush1.xpose.msra.mxu0 %v45
    %242 = vmatprep.subr.mxu0 0.0
    %243 = vmatpush1.xpose.msra.mxu0 0.0
    %244 = vmatprep.subr.mxu0 0.0
    %245 = vmatpush1.xpose.msra.mxu0 0.0
    %246 = vmatprep.subr.mxu0 0.0
    %247 = vmatpush1.xpose.msra.mxu0 0.0
    %248 = vmatprep.subr.mxu0 0.0
    %249 = vmatpush1.xpose.msra.mxu0 0.0
    %250 = vmatprep.subr.mxu0 0.0
    %251 = vmatpush1.xpose.msra.mxu0 0.0
    %252 = vmatprep.subr.mxu0 0.0
    %253 = vmatpush1.xpose.msra.mxu0 0.0
    %254 = vmatprep.subr.mxu0 0.0
    %255 = vmatpush1.xpose.msra.mxu0 0.0
    %256 = vmatprep.subr.mxu0 0.0
    %257 = vmatpush1.xpose.msra.mxu0 0.0
    %258 = vmatprep.subr.mxu0 0.0
    %259 = vmatpush1.xpose.msra.mxu0 0.0
    %260 = vmatprep.subr.mxu0 0.0
    %261 = vmatpush1.xpose.msra.mxu0 0.0
    %262 = vmatprep.subr.mxu0 0.0
    %263 = vmatpush1.xpose.msra.mxu0 0.0
    %264 = vmatprep.subr.mxu0 0.0
    %265 = vmatpush1.xpose.msra.mxu0 0.0
    %266 = vmatprep.subr.mxu0 0.0
    %267 = vmatpush1.xpose.msra.mxu0 0.0
    %268 = vmatprep.subr.mxu0 0.0
    %269 = vmatpush1.xpose.msra.mxu0 0.0
    %270 = vmatprep.subr.mxu0 0.0
    %271 = vmatpush1.xpose.msra.mxu0 0.0
    %272 = vmatprep.subr.mxu0 0.0
    %273 = vmatpush1.xpose.msra.mxu0 0.0
    %274 = vmatprep.subr.mxu0 0.0
    %275 = vmatpush1.xpose.msra.mxu0 0.0
    %276 = vmatprep.subr.mxu0 0.0
    %277 = vmatpush1.xpose.msra.mxu0 0.0
    %278 = vmatprep.subr.mxu0 0.0
    %279 = vmatpush1.xpose.msra.mxu0 0.0
    %280 = vmatprep.subr.mxu0 0.0
    %281 = vmatpush1.xpose.msra.mxu0 0.0
    %282 = vmatprep.subr.mxu0 0.0
    %283 = vmatpush1.xpose.msra.mxu0 0.0
    %284 = vmatprep.subr.mxu0 0.0
    %285 = vmatpush1.xpose.msra.mxu0 0.0
    %286 = vmatprep.subr.mxu0 0.0
    %287 = vmatpush1.xpose.msra.mxu0 0.0
    %288 = vmatprep.subr.mxu0 0.0
    %289 = vmatpush1.xpose.msra.mxu0 0.0
    %290 = vmatprep.subr.mxu0 0.0
    %291 = vmatpush1.xpose.msra.mxu0 0.0
    %292 = vmatprep.subr.mxu0 0.0
    %293 = vmatpush1.xpose.msra.mxu0 0.0
    %294 = vmatprep.subr.mxu0 0.0
    %295 = vmatpush1.xpose.msra.mxu0 0.0
    %296 = vmatprep.subr.mxu0 0.0
    %297 = vmatpush1.xpose.msra.mxu0 0.0
    %298 = vmatprep.subr.mxu0 0.0
    %299 = vmatpush1.xpose.msra.mxu0 0.0
    %300 = vmatprep.subr.mxu0 0.0
    %301 = vmatpush1.xpose.msra.mxu0 0.0
    %302 = vmatprep.subr.mxu0 0.0
    %303 = vmatpush1.xpose.msra.mxu0 0.0
    %304 = vmatprep.mubr.f32.mxu0 %v90
    %305 = vmatmul.mubr.f32.gmra.mrb[0].mxu0 %v82
    %v306 = vpop.f32.mrb[0].mxu0
    %v307 = vadd.f32 %v237, %v306
    %v308 = vpop.f32.mrb[0].mxu0
    %309 = vdwg.mxu0
    %310 = vmatprep.subr.mxu0 %v48
    %311 = vmatpush1.xpose.msra.mxu0 %v47
    %312 = vmatprep.subr.mxu0 0.0
    %313 = vmatpush1.xpose.msra.mxu0 0.0
    %314 = vmatprep.subr.mxu0 0.0
    %315 = vmatpush1.xpose.msra.mxu0 0.0
    %316 = vmatprep.subr.mxu0 0.0
    %317 = vmatpush1.xpose.msra.mxu0 0.0
    %318 = vmatprep.subr.mxu0 0.0
    %319 = vmatpush1.xpose.msra.mxu0 0.0
    %320 = vmatprep.subr.mxu0 0.0
    %321 = vmatpush1.xpose.msra.mxu0 0.0
    %322 = vmatprep.subr.mxu0 0.0
    %323 = vmatpush1.xpose.msra.mxu0 0.0
    %324 = vmatprep.subr.mxu0 0.0
    %325 = vmatpush1.xpose.msra.mxu0 0.0
    %326 = vmatprep.subr.mxu0 0.0
    %327 = vmatpush1.xpose.msra.mxu0 0.0
    %328 = vmatprep.subr.mxu0 0.0
    %329 = vmatpush1.xpose.msra.mxu0 0.0
    %330 = vmatprep.subr.mxu0 0.0
    %331 = vmatpush1.xpose.msra.mxu0 0.0
    %332 = vmatprep.subr.mxu0 0.0
    %333 = vmatpush1.xpose.msra.mxu0 0.0
    %334 = vmatprep.subr.mxu0 0.0
    %335 = vmatpush1.xpose.msra.mxu0 0.0
    %336 = vmatprep.subr.mxu0 0.0
    %337 = vmatpush1.xpose.msra.mxu0 0.0
    %338 = vmatprep.subr.mxu0 0.0
    %339 = vmatpush1.xpose.msra.mxu0 0.0
    %340 = vmatprep.subr.mxu0 0.0
    %341 = vmatpush1.xpose.msra.mxu0 0.0
    %342 = vmatprep.subr.mxu0 0.0
    %343 = vmatpush1.xpose.msra.mxu0 0.0
    %344 = vmatprep.subr.mxu0 0.0
    %345 = vmatpush1.xpose.msra.mxu0 0.0
    %346 = vmatprep.subr.mxu0 0.0
    %347 = vmatpush1.xpose.msra.mxu0 0.0
    %348 = vmatprep.subr.mxu0 0.0
    %349 = vmatpush1.xpose.msra.mxu0 0.0
    %350 = vmatprep.subr.mxu0 0.0
    %351 = vmatpush1.xpose.msra.mxu0 0.0
    %352 = vmatprep.subr.mxu0 0.0
    %353 = vmatpush1.xpose.msra.mxu0 0.0
    %354 = vmatprep.subr.mxu0 0.0
    %355 = vmatpush1.xpose.msra.mxu0 0.0
    %356 = vmatprep.subr.mxu0 0.0
    %357 = vmatpush1.xpose.msra.mxu0 0.0
    %358 = vmatprep.subr.mxu0 0.0
    %359 = vmatpush1.xpose.msra.mxu0 0.0
    %360 = vmatprep.subr.mxu0 0.0
    %361 = vmatpush1.xpose.msra.mxu0 0.0
    %362 = vmatprep.subr.mxu0 0.0
    %363 = vmatpush1.xpose.msra.mxu0 0.0
    %364 = vmatprep.subr.mxu0 0.0
    %365 = vmatpush1.xpose.msra.mxu0 0.0
    %366 = vmatprep.subr.mxu0 0.0
    %367 = vmatpush1.xpose.msra.mxu0 0.0
    %368 = vmatprep.subr.mxu0 0.0
    %369 = vmatpush1.xpose.msra.mxu0 0.0
    %370 = vmatprep.subr.mxu0 0.0
    %371 = vmatpush1.xpose.msra.mxu0 0.0
    %372 = vmatprep.subr.mxu0 0.0
    %373 = vmatpush1.xpose.msra.mxu0 0.0
    %374 = vmatprep.mubr.f32.mxu0 %v91
    %375 = vmatmul.mubr.f32.gmra.mrb[0].mxu0 %v89
    %v376 = vpop.f32.mrb[0].mxu0
    %v377 = vadd.f32 %v307, %v376
    %v378 = vpop.f32.mrb[0].mxu0
    %379 = vdwg.mxu0
    %v380 = vxor.u32 %v377, 2147483648
    %v381 = vmul.f32 %v380, 1.442695
    %v382 = vpow.pop %v381
    %v383 = vadd.f32 %v382, 1.0
    %v384 = vrcp.pop %v383
    %v385 = vmul.f32 1.0, %v384
    %vm386 = vcmask 58368
    %387 = vst.msk [vmem:[#allocation7] sm:$0x3] %vm386, %v385
    // Predicated region
    $region22: #{tpu_custom_call.1} parent=1 // pred_check
      _
    $region23: #{tpu_custom_call.1} parent=1 // pred_check_branch
      %389 = sbr.rel (0) target = $region25
    $region24: #{tpu_custom_call.1} parent=1 // pred_region
      %s391 = ssub.s32 32, 32
      %392 = vsyncadd [#allocation4], %s391
      %s394 = sshll.u32 [#allocation7], 4
      %s395 = int_to_ptr.vmem [resolvable:$true] %s394
      %397 = dma.vmem_to_hbm [thread:$0]  %s395, 32, %s3, [#allocation4]
    $region25: #{tpu_custom_call.1} parent=1 // pred_fallthru
      _
    // Predicated region
    $region26: #{tpu_custom_call.1} parent=1 // pred_check
      _
    $region27: #{tpu_custom_call.1} parent=1 // pred_check_branch
      %399 = sbr.rel (0) target = $region29
    $region28: #{tpu_custom_call.1} parent=1 // pred_region
      %400 = dma.done [#allocation4], 32
    $region29: #{tpu_custom_call.1} parent=1 // pred_fallthru
      _
    %401 = vsyncpa [#allocation3], 1
    %402 = vsyncpa [#allocation6], 1
    %403 = vsyncpa [#allocation4], 1

</llo_original>
